<compile_context>
chip_gen: v7x
topology: tpu7x:2x2x1
jax: 0.10.0
libtpu: 0.0.40
codegen_flags: <defaults>
</compile_context>

<pallas_src>
import math

import jax
import jax.numpy as jnp
from jax.experimental import pallas as pl
from jax.experimental.pallas import tpu as pltpu


def _round_up(x, m):
    return (x + m - 1) // m * m


# ----------------------------------------------------------------------------
# Fourier positional features (parameter/buffer setup, matches torch exactly)
# ----------------------------------------------------------------------------
def fourier_features(shape, bands):
    dims = len(shape)
    coords = [jnp.linspace(-1.0, 1.0, n, dtype=jnp.float32) for n in shape]
    pos = jnp.stack(jnp.meshgrid(*coords, indexing="ij"))            # (dims, *shape)
    pos = jnp.broadcast_to(pos[None], (bands,) + pos.shape)          # (bands, dims, *shape)
    # torch.logspace(ln 1, ln(shape[0]/2), bands, base=e) == exp(linspace(...))
    band_freqs = jnp.exp(
        jnp.linspace(math.log(1.0), math.log(shape[0] / 2.0), bands, dtype=jnp.float32)
    ).reshape((bands,) + (1,) * (dims + 1))
    result = (band_freqs * math.pi * pos).reshape((dims * bands,) + tuple(shape))
    return jnp.concatenate([jnp.sin(result), jnp.cos(result)], axis=0)  # (2*dims*bands, *shape)


# ----------------------------------------------------------------------------
# Pallas kernel: per-(batch, N-tile) channel matmul + fused Fourier projection
# ----------------------------------------------------------------------------
def _conv1x1_kernel(x_ref, w_ref, enc_ref, o_ref):
    # x_ref:   (1, Cpad, TN)   image channels (zero-padded to sublane multiple)
    # w_ref:   (E, Cpad)       image-channel slice of the Conv1d weight (resident)
    # enc_ref: (E, TN)         precomputed W_ff @ ff + bias, batch-invariant
    # o_ref:   (1, E, TN)
    acc = jnp.dot(w_ref[...], x_ref[0], preferred_element_type=jnp.float32)
    acc = acc + enc_ref[...].astype(jnp.float32)
    o_ref[0] = acc.astype(o_ref.dtype)


def positional_conv1x1(x_flat, w_img, enc_proj, *, out_dtype,
                       compute_dtype=None, tile_n=2048):
    """x_flat: (B, C, N); w_img: (E, C); enc_proj: (E, N) -> (N, B, E)."""
    B, C, N = x_flat.shape
    E = w_img.shape[0]

    cdt = jnp.dtype(compute_dtype) if compute_dtype is not None else jnp.dtype(x_flat.dtype)

    # Sublane alignment on the contraction axis: 8 for 4-byte, 16 for 2-byte dtypes.
    sub = max(8, 32 // cdt.itemsize)
    c_pad = _round_up(C, sub)

    # Lane-axis (N) tiling: multiple of 128, capped at tile_n.
    tn = min(int(tile_n), _round_up(N, 128))
    n_pad = _round_up(N, tn)

    x_p = jnp.zeros((B, c_pad, n_pad), cdt).at[:, :C, :N].set(x_flat.astype(cdt))
    w_p = jnp.zeros((E, c_pad), cdt).at[:, :C].set(w_img.astype(cdt))
    enc_p = jnp.zeros((E, n_pad), cdt).at[:, :N].set(enc_proj.astype(cdt))

    grid = (B, n_pad // tn)

    out_itemsize = jnp.dtype(out_dtype).itemsize
    cost = pl.CostEstimate(
        flops=2 * B * E * c_pad * n_pad,
        transcendentals=0,
        bytes_accessed=(x_p.size * x_p.dtype.itemsize
                        + w_p.size * w_p.dtype.itemsize
                        + B * enc_p.size * enc_p.dtype.itemsize
                        + B * E * n_pad * out_itemsize),
    )

    out = pl.pallas_call(
        _conv1x1_kernel,
        out_shape=jax.ShapeDtypeStruct((B, E, n_pad), out_dtype),
        grid_spec=pltpu.PrefetchScalarGridSpec(
            num_scalar_prefetch=0,
            grid=grid,
            in_specs=[
                pl.BlockSpec((1, c_pad, tn), lambda b, n: (b, 0, n)),
                pl.BlockSpec((E, c_pad), lambda b, n: (0, 0)),   # weight stays resident
                pl.BlockSpec((E, tn), lambda b, n: (0, n)),
            ],
            out_specs=pl.BlockSpec((1, E, tn), lambda b, n: (b, 0, n)),
        ),
        compiler_params=pltpu.CompilerParams(
            dimension_semantics=("parallel", "parallel")),
        cost_estimate=cost,
    )(x_p, w_p, enc_p)

    out = out[:, :, :N]                                  # drop N padding (no-op if aligned)
    return jnp.transpose(out, (2, 0, 1))                 # (N, B, E)


# ----------------------------------------------------------------------------
# Module-equivalent wrapper
# ----------------------------------------------------------------------------
class PositionalImageEmbedding:
    def __init__(self, input_shape, input_channels, embed_dim, bands=4, *,
                 key, compute_dtype=None, tile_n=2048):
        self.input_channels = input_channels
        self.embed_dim = embed_dim
        self.compute_dtype = compute_dtype
        self.tile_n = tile_n

        self.ff = fourier_features(input_shape, bands)               # (FF, H, W)
        ff_ch = self.ff.shape[0]
        cin = input_channels + ff_ch

        # Deterministic init mimicking nn.Conv1d default (uniform +/- 1/sqrt(fan_in))
        kw, kb = jax.random.split(key)
        bound = 1.0 / math.sqrt(cin)
        self.weight = jax.random.uniform(kw, (embed_dim, cin), jnp.float32, -bound, bound)
        self.bias = jax.random.uniform(kb, (embed_dim,), jnp.float32, -bound, bound)

        # Batch-invariant fused Fourier projection (E, N): W_ff @ ff_flat + bias.
        ff_flat = self.ff.reshape(ff_ch, -1)
        self.enc_proj = self.weight[:, input_channels:] @ ff_flat + self.bias[:, None]

    def __call__(self, x):
        B, C, H, W = x.shape
        x_flat = x.reshape(B, C, H * W)
        return positional_conv1x1(
            x_flat,
            self.weight[:, :C],
            self.enc_proj,
            out_dtype=x.dtype,
            compute_dtype=self.compute_dtype,
            tile_n=self.tile_n,
        )


if __name__ == "__main__":
    B, C, H, W = 2, 4, 16, 16
    EMBED, BANDS = 32, 4

    key = jax.random.PRNGKey(0)
    kx, kp = jax.random.split(key)
    x = jax.random.normal(kx, (B, C, H, W), jnp.float32)

    module = PositionalImageEmbedding((H, W), C, EMBED, bands=BANDS, key=kp)
    out = jax.block_until_ready(module(x))

    # Pure-JAX reference (mirrors the PyTorch forward: concat -> 1x1 conv -> permute).
    enc = jnp.broadcast_to(module.ff[None], (B,) + module.ff.shape)
    xcat = jnp.concatenate([x, enc], axis=1).reshape(B, -1, H * W)
    ref = jnp.einsum("ec,bcn->ben", module.weight, xcat) + module.bias[None, :, None]
    ref = jnp.transpose(ref, (2, 0, 1))

    assert out.shape == (H * W, B, EMBED), out.shape
    assert jnp.allclose(out, ref, atol=1e-4, rtol=1e-4)

    # bf16 storage / MXU-input path (f32 accumulate) — looser tolerance.
    module_bf16 = PositionalImageEmbedding((H, W), C, EMBED, bands=BANDS, key=kp,
                                           compute_dtype=jnp.bfloat16)
    out_bf16 = jax.block_until_ready(module_bf16(x))
    assert out_bf16.shape == (H * W, B, EMBED), out_bf16.shape
    assert jnp.allclose(out_bf16, ref, atol=1e-1, rtol=1e-1)

    print("KERNEL_OK")
</pallas_src>

<mosaic_0001>
module attributes {stable_mosaic.version = 11 : i64} {
  func.func @_conv1x1_kernel(%arg0: i32, %arg1: i32, %arg2: memref<1x8x256xf32, #tpu.memory_space<vmem>>, %arg3: memref<32x8xf32, #tpu.memory_space<vmem>>, %arg4: memref<32x256xf32, #tpu.memory_space<vmem>>, %arg5: memref<1x32x256xf32, #tpu.memory_space<vmem>>) attributes {dimension_semantics = [#tpu.dimension_semantics<parallel>, #tpu.dimension_semantics<parallel>], iteration_bounds = array<i64: 2, 1>, scalar_prefetch = 0 : i64, scratch_operands = 0 : i64, tpu.core_type = #tpu.core_type<tc>, window_params = [{transform_indices = @transform_0, window_bounds = array<i64: 1, 8, 256>}, {pipeline_mode = #tpu.pipeline_mode<synchronous>, transform_indices = @transform_1, window_bounds = array<i64: 32, 8>}, {transform_indices = @transform_2, window_bounds = array<i64: 32, 256>}, {transform_indices = @transform_3, window_bounds = array<i64: 1, 32, 256>}]} {
    %c0 = arith.constant 0 : index
    %c0_0 = arith.constant 0 : index
    %0 = vector.load %arg3[%c0, %c0_0] : memref<32x8xf32, #tpu.memory_space<vmem>>, vector<32x8xf32>
    %c0_1 = arith.constant 0 : index
    %c0_2 = arith.constant 0 : index
    %c0_3 = arith.constant 0 : index
    %1 = vector.load %arg2[%c0_1, %c0_2, %c0_3] : memref<1x8x256xf32, #tpu.memory_space<vmem>>, vector<1x8x256xf32>
    %2 = vector.shape_cast %1 : vector<1x8x256xf32> to vector<8x256xf32>
    %cst = arith.constant dense<0.000000e+00> : vector<32x256xf32>
    %3 = tpu.matmul %0, %2, %cst {dimension_numbers = #tpu.dot_dimension_numbers<[1], [0], [0], [1], [0, 0, 1, 1], [], []>} : vector<32x8xf32>, vector<8x256xf32>, vector<32x256xf32> -> vector<32x256xf32>
    %c0_4 = arith.constant 0 : index
    %c0_5 = arith.constant 0 : index
    %4 = vector.load %arg4[%c0_4, %c0_5] : memref<32x256xf32, #tpu.memory_space<vmem>>, vector<32x256xf32>
    %5 = arith.addf %3, %4 : vector<32x256xf32>
    %c0_6 = arith.constant 0 : index
    %c0_7 = arith.constant 0 : index
    %c0_8 = arith.constant 0 : index
    %6 = vector.load %arg5[%c0_6, %c0_7, %c0_8] : memref<1x32x256xf32, #tpu.memory_space<vmem>>, vector<1x32x256xf32>
    %7 = vector.shape_cast %6 : vector<1x32x256xf32> to vector<32x256xf32>
    %8 = vector.shape_cast %5 : vector<32x256xf32> to vector<1x32x256xf32>
    tpu.vector_store %arg5[%c0_6, %c0_7, %c0_8], %8 {strides = array<i32>} : memref<1x32x256xf32, #tpu.memory_space<vmem>>, vector<1x32x256xf32>,
    return
  }
  func.func @transform_0(%arg0: i32, %arg1: i32) -> (i32, i32, i32) {
    %c0_i32 = arith.constant 0 : i32
    %c0_i32_0 = arith.constant 0 : i32
    return %arg0, %c0_i32, %arg1 : i32, i32, i32
  }
  func.func @transform_1(%arg0: i32, %arg1: i32) -> (i32, i32) {
    %c0_i32 = arith.constant 0 : i32
    %c0_i32_0 = arith.constant 0 : i32
    %c0_i32_1 = arith.constant 0 : i32
    return %c0_i32, %c0_i32_0 : i32, i32
  }
  func.func @transform_2(%arg0: i32, %arg1: i32) -> (i32, i32) {
    %c0_i32 = arith.constant 0 : i32
    %c0_i32_0 = arith.constant 0 : i32
    return %c0_i32, %arg1 : i32, i32
  }
  func.func @transform_3(%arg0: i32, %arg1: i32) -> (i32, i32, i32) {
    %c0_i32 = arith.constant 0 : i32
    %c0_i32_0 = arith.constant 0 : i32
    return %arg0, %c0_i32, %arg1 : i32, i32, i32
  }
}

</mosaic_0001>

<llo_original>
// kernel: tpu_custom_call.1
$region0: #{tpu_custom_call.1}
  #allocation0 [shape = 'u32[]', space=smem, size = 0x4, offset = 0x4, fixed_abs, tag = 'smem constant byte address 0x4 - core index']
  #allocation1 [shape = 'u32[144,128]{1,0:T(1,128)}', space=vmem, size = 0x12000, scoped, tag = 'internal scratch']
  %s0 = inlined_call_operand.vmem [shape: f32[2,8,256], index: 0, kind: input, shape index: {}]
  %s1 = inlined_call_operand.vmem [shape: f32[32,8], index: 1, kind: input, shape index: {}]
  %s2 = inlined_call_operand.hbm [shape: f32[32,256], index: 2, kind: input, shape index: {}]
  %s3 = inlined_call_operand.hbm [shape: f32[2,32,256], index: 3, kind: output, shape index: {}]
  %s4 = sld [smem:[#allocation0]]
  $region49: #{tpu_custom_call.1} parent=0
    _
  %s6 = ssub.s32 1, %s4
  %s7 = scalar_select 0, %s6, %s4
  $region1: #{tpu_custom_call.1} parent=0
    #allocation2 [shape = 'u8[32768]{0}', space=vmem, size = 0x8000, scoped, tag = 'input window, operand 2, single buffered']
    #allocation3 [shape = 's32[2]{0}', space=sflag, size = 0x8, scoped, tag = 'scoped memory for tpu_custom_call.1']
    #allocation4 [shape = 's32[2]{0}', space=sflag, size = 0x8, scoped, tag = 'scoped memory for tpu_custom_call.1']
    #allocation5 [shape = 'u8[65536]{0}', space=vmem, size = 0x10000, scoped, tag = 'output window, operand 0']
    %8 = vsyncpa [#allocation3], 0
    %9 = vsyncpa [#allocation4], 0
    %s10 = scalar_lea.sflag [#allocation4], 1
    %11 = vsyncpa %s10, 0
    loop: start=0, step=1, limit=4
    $region2: #{tpu_custom_call.1} parent=1 // loop_pre_header
      _
    $region3: #{tpu_custom_call.1} parent=1 // loop_header
      %s13 = sphi 0, %s17
      %p14 = scmp.ge.s32.totalorder %s13, 4
      %s20 = sphi 0, %s32
      %s21 = sphi 0, %s28
      %s22 = sphi 0, %s20
      %s23 = sphi 0, %s21
      %s24 = sphi 0, %s22
      %s25 = sphi 0, %s23
      %s37 = sphi 0, %s39
      %s40 = sphi 0, %s37
      %s41 = sphi 0, %s40
      %s57 = sphi 0, %s41
      %s61 = sphi 0, %s61
      %s63 = sphi 0, %s61
      %s64 = sphi 0, %s63
      %s78 = sphi 0, %s64
      %s84 = sphi 0, %s86
      %s87 = sphi 0, %s84
      %s88 = sphi 0, %s87
      %s104 = sphi 0, %s88
      %s112 = sphi 0, %s114
      %s115 = sphi 0, %s112
      %s116 = sphi 0, %s115
      %s132 = sphi 0, %s116
    $region4: #{tpu_custom_call.1} parent=1 // loop_header_branch
      %16 = sbr.rel (%p14) target = $region8
    $region5: #{tpu_custom_call.1} parent=1 // loop_body
      %s18 = ssub.s32 %s13, 1
      %s19 = ssub.s32 %s13, 2
      %s26 = sadd.s32 1, %s21
      %p27 = scmp.ge.s32.totalorder %s26, 1
      %s28 = scalar_select %p27, 0, %s26
      %s29 = sadd.s32 1, %s20
      %s30 = scalar_select %p27, %s29, %s20
      %p31 = scmp.ge.s32.totalorder %s30, 2
      %s32 = scalar_select %p31, 0, %s30
      %s33 = ssub.s32 %s20, %s32
      %s34 = ssub.s32 %s21, %s28
      %s35 = sor.u32 %s33, %s34
      %p36 = scmp.eq.s32.totalorder %s35, 0
      %s38 = sadd.s32 %s37, 1
      %s39 = scalar_select %p36, %s37, %s38
      %p42 = pneg %p36
      %p43 = scmp.eq.s32.totalorder %s13, 1
      %p44 = por %p42, %p43
      %p45 = scmp.ne.s32.totalorder %s37, %s40
      %p46 = scmp.eq.s32.totalorder %s13, 0
      %p47 = por %p45, %p46
      %p48 = scmp.ne.s32.totalorder %s37, %s40
      %p49 = scmp.eq.s32.totalorder %s18, 1
      %p50 = por %p48, %p49
      %p51 = scmp.ne.s32.totalorder %s40, %s41
      %p52 = scmp.eq.s32.totalorder %s18, 0
      %p53 = por %p51, %p52
      %p54 = scmp.ne.s32.totalorder %s40, %s41
      %p55 = scmp.eq.s32.totalorder %s19, 1
      %p56 = por %p54, %p55
      %p58 = scmp.ne.s32.totalorder %s41, %s57
      %p59 = scmp.eq.s32.totalorder %s19, 0
      %p60 = por %p58, %p59
      %s62 = sadd.s32 %s61, 1
      %p65 = scmp.eq.s32.totalorder %s13, 1
      %p66 = scmp.ne.s32.totalorder %s61, %s63
      %p67 = scmp.eq.s32.totalorder %s13, 0
      %p68 = por %p66, %p67
      %p69 = scmp.ne.s32.totalorder %s61, %s63
      %p70 = scmp.eq.s32.totalorder %s18, 1
      %p71 = por %p69, %p70
      %p72 = scmp.ne.s32.totalorder %s63, %s64
      %p73 = scmp.eq.s32.totalorder %s18, 0
      %p74 = por %p72, %p73
      %p75 = scmp.ne.s32.totalorder %s63, %s64
      %p76 = scmp.eq.s32.totalorder %s19, 1
      %p77 = por %p75, %p76
      %p79 = scmp.ne.s32.totalorder %s64, %s78
      %p80 = scmp.eq.s32.totalorder %s19, 0
      %p81 = por %p79, %p80
      %s82 = ssub.s32 %s21, %s28
      %p83 = scmp.eq.s32.totalorder %s82, 0
      %s85 = sadd.s32 %s84, 1
      %s86 = scalar_select %p83, %s84, %s85
      %p89 = pneg %p83
      %p90 = scmp.eq.s32.totalorder %s13, 1
      %p91 = por %p89, %p90
      %p92 = scmp.ne.s32.totalorder %s84, %s87
      %p93 = scmp.eq.s32.totalorder %s13, 0
      %p94 = por %p92, %p93
      %p95 = scmp.ne.s32.totalorder %s84, %s87
      %p96 = scmp.eq.s32.totalorder %s18, 1
      %p97 = por %p95, %p96
      %p98 = scmp.ne.s32.totalorder %s87, %s88
      %p99 = scmp.eq.s32.totalorder %s18, 0
      %p100 = por %p98, %p99
      %p101 = scmp.ne.s32.totalorder %s87, %s88
      %p102 = scmp.eq.s32.totalorder %s19, 1
      %p103 = por %p101, %p102
      %p105 = scmp.ne.s32.totalorder %s88, %s104
      %p106 = scmp.eq.s32.totalorder %s19, 0
      %p107 = por %p105, %p106
      %s108 = ssub.s32 %s20, %s32
      %s109 = ssub.s32 %s21, %s28
      %s110 = sor.u32 %s108, %s109
      %p111 = scmp.eq.s32.totalorder %s110, 0
      %s113 = sadd.s32 %s112, 1
      %s114 = scalar_select %p111, %s112, %s113
      %p117 = pneg %p111
      %p118 = scmp.eq.s32.totalorder %s13, 1
      %p119 = por %p117, %p118
      %p120 = scmp.ne.s32.totalorder %s112, %s115
      %p121 = scmp.eq.s32.totalorder %s13, 0
      %p122 = por %p120, %p121
      %p123 = scmp.ne.s32.totalorder %s112, %s115
      %p124 = scmp.eq.s32.totalorder %s18, 1
      %p125 = por %p123, %p124
      %p126 = scmp.ne.s32.totalorder %s115, %s116
      %p127 = scmp.eq.s32.totalorder %s18, 0
      %p128 = por %p126, %p127
      %p129 = scmp.ne.s32.totalorder %s115, %s116
      %p130 = scmp.eq.s32.totalorder %s19, 1
      %p131 = por %p129, %p130
      %p133 = scmp.ne.s32.totalorder %s116, %s132
      %p134 = scmp.eq.s32.totalorder %s19, 0
      %p135 = por %p133, %p134
      %p136 = scmp.le.s32.totalorder 1, %s13
      %p137 = scmp.lt.s32.totalorder %s13, 3
      %p138 = pnand %p136, %p137
      %p139 = pneg %p138
      // Predicated region
      $region9: #{tpu_custom_call.1} parent=5 // pred_check
        _
      $region10: #{tpu_custom_call.1} parent=5 // pred_check_branch
        %141 = sbr.rel (%p138) target = $region12
      $region11: #{tpu_custom_call.1} parent=5 // pred_region
        %s142 = ssub.s32 %s13, 1
        // Predicated region
        $region13: #{tpu_custom_call.1} parent=11 // pred_check
          %p143 = pneg %p74
        $region14: #{tpu_custom_call.1} parent=11 // pred_check_branch
          %145 = sbr.rel (%p143) target = $region16
        $region15: #{tpu_custom_call.1} parent=11 // pred_region
          _
        $region16: #{tpu_custom_call.1} parent=11 // pred_fallthru
          _
        // Predicated region
        $region17: #{tpu_custom_call.1} parent=11 // pred_check
          %p146 = pneg %p100
        $region18: #{tpu_custom_call.1} parent=11 // pred_check_branch
          %148 = sbr.rel (%p146) target = $region20
        $region19: #{tpu_custom_call.1} parent=11 // pred_region
          %s149 = smul.u32 2, %s23
          %s151 = ssub.s32 1024, 1024
          %152 = vsyncadd [#allocation3], %s151
          %s153 = smul.addr %s149, 128
          %s154 = scalar_lea.hbm %s2, %s153
          %s155 = sshll.u32 [#allocation2], 4
          %s156 = int_to_ptr.vmem [resolvable:$true] %s155
          %161 = dma.hbm_to_vmem [thread:$0]  %s154, 1024, %s156, [#allocation3], 256, 256, 16
        $region20: #{tpu_custom_call.1} parent=11 // pred_fallthru
          _
      $region12: #{tpu_custom_call.1} parent=5 // pred_fallthru
        _
      %p162 = scmp.lt.s32.totalorder %s13, 2
      // Predicated region
      $region21: #{tpu_custom_call.1} parent=5 // pred_check
        %p163 = pneg %p162
      $region22: #{tpu_custom_call.1} parent=5 // pred_check_branch
        %165 = sbr.rel (%p163) target = $region24
      $region23: #{tpu_custom_call.1} parent=5 // pred_region
        // Predicated region
        $region25: #{tpu_custom_call.1} parent=23 // pred_check
          %p166 = pneg %p47
        $region26: #{tpu_custom_call.1} parent=23 // pred_check_branch
          %168 = sbr.rel (%p166) target = $region28
        $region27: #{tpu_custom_call.1} parent=23 // pred_region
          %s169 = smul.u32 2, %s21
          %p170 = scmp.lt.s32.totalorder %s20, 1
          %s171 = scalar_select %p170, %s20, 1
          %p172 = scmp.lt.s32.totalorder %s169, 1
          %s173 = scalar_select %p172, %s169, 1
          %s174 = smul.addr %s171, 2
          %s175 = sadd.s32 %s173, %s174
          %s176 = smul.addr %s175, 8
          %s177 = scalar_lea.vmem %s0, %s176
          %s178 = smul.u32 2, %s21
        $region28: #{tpu_custom_call.1} parent=23 // pred_fallthru
          _
      $region24: #{tpu_custom_call.1} parent=5 // pred_fallthru
        _
      %p179 = scmp.le.s32.totalorder 1, %s13
      %p180 = scmp.lt.s32.totalorder %s13, 3
      %p181 = pnand %p179, %p180
      %p182 = pneg %p181
      // Predicated region
      $region29: #{tpu_custom_call.1} parent=5 // pred_check
        _
      $region30: #{tpu_custom_call.1} parent=5 // pred_check_branch
        %184 = sbr.rel (%p181) target = $region32
      $region31: #{tpu_custom_call.1} parent=5 // pred_region
        %s185 = ssub.s32 %s13, 1
        // Predicated region
        $region33: #{tpu_custom_call.1} parent=31 // pred_check
          %p186 = pneg %p100
        $region34: #{tpu_custom_call.1} parent=31 // pred_check_branch
          %188 = sbr.rel (%p186) target = $region36
        $region35: #{tpu_custom_call.1} parent=31 // pred_region
          %189 = dma.done [#allocation3], 1024
        $region36: #{tpu_custom_call.1} parent=31 // pred_fallthru
          _
        %s190 = smul.u32 2, %s23
        %p191 = scmp.lt.s32.totalorder %s22, 1
        %s192 = scalar_select %p191, %s22, 1
        %p193 = scmp.lt.s32.totalorder %s190, 1
        %s194 = scalar_select %p193, %s190, 1
        %s195 = smul.addr %s192, 2
        %s196 = sadd.s32 %s194, %s195
        %s197 = smul.addr %s196, 8
        %s198 = scalar_lea.vmem %s0, %s197
        %p199 = pneg %p53
        %p200 = pneg %p50
        %p201 = pneg %p74
        %p202 = pneg %p71
        %p203 = pneg %p100
        %p204 = pneg %p97
        %p205 = pneg %p128
        %p206 = pneg %p125
        %s207 = sand.u32 %s115, 1
        %s208 = scalar_lea.sflag [#allocation4], %s207
        %s209 = sand.u32 %s115, 1
        %s210 = smul.addr %s209, 64
        %s211 = scalar_lea.vmem [#allocation5], %s210
        %s212 = smul.u32 2, %s23
        %p213 = scmp.lt.s32.totalorder %s22, 1
        %s214 = scalar_select %p213, %s22, 1
        %p215 = scmp.lt.s32.totalorder %s212, 1
        %s216 = scalar_select %p215, %s212, 1
        %s217 = smul.addr %s214, 2
        %s218 = sadd.s32 %s216, %s217
        %s219 = smul.addr %s218, 8
        %s220 = scalar_lea.vmem %s0, %s219
        %s221 = smul.u32 2, %s23
        %s222 = smul.u32 2, %s23
        %s223 = smul.u32 2, %s23
        %v224 = vld [vmem:[%s1] sm:$0xff]
        %v225 = vld [vmem:[%s1 + $0x8] sm:$0xff]
        %v226 = vld [vmem:[%s1 + $0x10] sm:$0xff]
        %v227 = vld [vmem:[%s1 + $0x18] sm:$0xff]
        %v228 = vld [vmem:[%s220] sm:$0xff]
        %v229 = vld [vmem:[%s220 + $0x8] sm:$0xff]
        %v230 = vld [vmem:[#allocation2] sm:$0xff]
        %v231 = vld [vmem:[#allocation2 + $0x8] sm:$0xff]
        %v232 = vld [vmem:[#allocation2 + $0x10] sm:$0xff]
        %v233 = vld [vmem:[#allocation2 + $0x18] sm:$0xff]
        %v234 = vld [vmem:[#allocation2 + $0x20] sm:$0xff]
        %v235 = vld [vmem:[#allocation2 + $0x28] sm:$0xff]
        %v236 = vld [vmem:[#allocation2 + $0x30] sm:$0xff]
        %v237 = vld [vmem:[#allocation2 + $0x38] sm:$0xff]
        %vm238 = vcmask 64512
        %v240 = vsel %vm238, %v224, 0
        %v243 = vsel %vm238, %v225, 0
        %v246 = vsel %vm238, %v226, 0
        %v249 = vsel %vm238, %v227, 0
        %251 = vmatprep.subr.mxu0 %v229
        %252 = vmatpush1.msra.mxu0 %v228
        %253 = vmatprep.subr.mxu0 0.0
        %254 = vmatpush1.msra.mxu0 0.0
        %255 = vmatprep.subr.mxu0 0.0
        %256 = vmatpush1.msra.mxu0 0.0
        %257 = vmatprep.subr.mxu0 0.0
        %258 = vmatpush1.msra.mxu0 0.0
        %259 = vmatprep.subr.mxu0 0.0
        %260 = vmatpush1.msra.mxu0 0.0
        %261 = vmatprep.subr.mxu0 0.0
        %262 = vmatpush1.msra.mxu0 0.0
        %263 = vmatprep.subr.mxu0 0.0
        %264 = vmatpush1.msra.mxu0 0.0
        %265 = vmatprep.subr.mxu0 0.0
        %266 = vmatpush1.msra.mxu0 0.0
        %267 = vmatprep.subr.mxu0 0.0
        %268 = vmatpush1.msra.mxu0 0.0
        %269 = vmatprep.subr.mxu0 0.0
        %270 = vmatpush1.msra.mxu0 0.0
        %271 = vmatprep.subr.mxu0 0.0
        %272 = vmatpush1.msra.mxu0 0.0
        %273 = vmatprep.subr.mxu0 0.0
        %274 = vmatpush1.msra.mxu0 0.0
        %275 = vmatprep.subr.mxu0 0.0
        %276 = vmatpush1.msra.mxu0 0.0
        %277 = vmatprep.subr.mxu0 0.0
        %278 = vmatpush1.msra.mxu0 0.0
        %279 = vmatprep.subr.mxu0 0.0
        %280 = vmatpush1.msra.mxu0 0.0
        %281 = vmatprep.subr.mxu0 0.0
        %282 = vmatpush1.msra.mxu0 0.0
        %283 = vmatprep.subr.mxu0 0.0
        %284 = vmatpush1.msra.mxu0 0.0
        %285 = vmatprep.subr.mxu0 0.0
        %286 = vmatpush1.msra.mxu0 0.0
        %287 = vmatprep.subr.mxu0 0.0
        %288 = vmatpush1.msra.mxu0 0.0
        %289 = vmatprep.subr.mxu0 0.0
        %290 = vmatpush1.msra.mxu0 0.0
        %291 = vmatprep.subr.mxu0 0.0
        %292 = vmatpush1.msra.mxu0 0.0
        %293 = vmatprep.subr.mxu0 0.0
        %294 = vmatpush1.msra.mxu0 0.0
        %295 = vmatprep.subr.mxu0 0.0
        %296 = vmatpush1.msra.mxu0 0.0
        %297 = vmatprep.subr.mxu0 0.0
        %298 = vmatpush1.msra.mxu0 0.0
        %299 = vmatprep.subr.mxu0 0.0
        %300 = vmatpush1.msra.mxu0 0.0
        %301 = vmatprep.subr.mxu0 0.0
        %302 = vmatpush1.msra.mxu0 0.0
        %303 = vmatprep.subr.mxu0 0.0
        %304 = vmatpush1.msra.mxu0 0.0
        %305 = vmatprep.subr.mxu0 0.0
        %306 = vmatpush1.msra.mxu0 0.0
        %307 = vmatprep.subr.mxu0 0.0
        %308 = vmatpush1.msra.mxu0 0.0
        %309 = vmatprep.subr.mxu0 0.0
        %310 = vmatpush1.msra.mxu0 0.0
        %311 = vmatprep.subr.mxu0 0.0
        %312 = vmatpush1.msra.mxu0 0.0
        %313 = vmatprep.subr.mxu0 0.0
        %314 = vmatpush1.msra.mxu0 0.0
        %315 = vmatprep.mubr.f32.mxu0 0.0
        %316 = vmatmul.mubr.f32.gmra.mrb[0].mxu0 %v240
        %v317 = vpop.f32.mrb[0].mxu0
        %v318 = vadd.f32 %v230, %v317
        %v319 = vpop.f32.mrb[0].mxu0
        %v320 = vadd.f32 %v231, %v319
        %321 = vmatprep.mubr.f32.mxu0 0.0
        %322 = vmatmul.mubr.f32.gmra.mrb[0].mxu0 %v243
        %v323 = vpop.f32.mrb[0].mxu0
        %v324 = vadd.f32 %v232, %v323
        %v325 = vpop.f32.mrb[0].mxu0
        %v326 = vadd.f32 %v233, %v325
        %327 = vmatprep.mubr.f32.mxu0 0.0
        %328 = vmatmul.mubr.f32.gmra.mrb[0].mxu0 %v246
        %v329 = vpop.f32.mrb[0].mxu0
        %v330 = vadd.f32 %v234, %v329
        %v331 = vpop.f32.mrb[0].mxu0
        %v332 = vadd.f32 %v235, %v331
        %333 = vmatprep.mubr.f32.mxu0 0.0
        %334 = vmatmul.mubr.f32.gmra.mrb[0].mxu0 %v249
        %v335 = vpop.f32.mrb[0].mxu0
        %v336 = vadd.f32 %v236, %v335
        %v337 = vpop.f32.mrb[0].mxu0
        %v338 = vadd.f32 %v237, %v337
        %339 = vdwg.mxu0
        %340 = vst [vmem:[%s211] sm:$0xff] %v318
        %341 = vst [vmem:[%s211 + $0x8] sm:$0xff] %v320
        %342 = vst [vmem:[%s211 + $0x10] sm:$0xff] %v324
        %343 = vst [vmem:[%s211 + $0x18] sm:$0xff] %v326
        %344 = vst [vmem:[%s211 + $0x20] sm:$0xff] %v330
        %345 = vst [vmem:[%s211 + $0x28] sm:$0xff] %v332
        %346 = vst [vmem:[%s211 + $0x30] sm:$0xff] %v336
        %347 = vst [vmem:[%s211 + $0x38] sm:$0xff] %v338
        %s348 = sand.u32 %s115, 1
        %s349 = scalar_lea.sflag [#allocation4], %s348
        %s350 = sand.u32 %s115, 1
        %s351 = smul.addr %s350, 64
        %s352 = scalar_lea.vmem [#allocation5], %s351
        // Predicated region
        $region37: #{tpu_custom_call.1} parent=31 // pred_check
          %p353 = pneg %p125
        $region38: #{tpu_custom_call.1} parent=31 // pred_check_branch
          %355 = sbr.rel (%p353) target = $region40
        $region39: #{tpu_custom_call.1} parent=31 // pred_region
          %s356 = smul.u32 2, %s23
          %s358 = ssub.s32 1024, 1024
          %359 = vsyncadd %s349, %s358
          %s360 = smul.addr %s22, 8
          %s361 = sadd.s32 %s356, %s360
          %s362 = smul.addr %s361, 128
          %s363 = scalar_lea.hbm %s3, %s362
          %s364 = sshll.u32 %s352, 4
          %s365 = int_to_ptr.vmem [resolvable:$true] %s364
          %370 = dma.vmem_to_hbm [thread:$0]  %s365, 1024, %s363, %s349, 256, 256, 16
        $region40: #{tpu_custom_call.1} parent=31 // pred_fallthru
          _
      $region32: #{tpu_custom_call.1} parent=5 // pred_fallthru
        _
      %p371 = scmp.le.s32.totalorder 2, %s13
      // Predicated region
      $region41: #{tpu_custom_call.1} parent=5 // pred_check
        %p372 = pneg %p371
      $region42: #{tpu_custom_call.1} parent=5 // pred_check_branch
        %374 = sbr.rel (%p372) target = $region44
      $region43: #{tpu_custom_call.1} parent=5 // pred_region
        %s375 = ssub.s32 %s13, 2
        // Predicated region
        $region45: #{tpu_custom_call.1} parent=43 // pred_check
          %p376 = pneg %p131
        $region46: #{tpu_custom_call.1} parent=43 // pred_check_branch
          %378 = sbr.rel (%p376) target = $region48
        $region47: #{tpu_custom_call.1} parent=43 // pred_region
          %s379 = sand.u32 %s116, 1
          %s380 = scalar_lea.sflag [#allocation4], %s379
          %s381 = sand.u32 %s116, 1
          %s382 = smul.addr %s381, 64
          %s383 = scalar_lea.vmem [#allocation5], %s382
          %384 = dma.done %s380, 1024
        $region48: #{tpu_custom_call.1} parent=43 // pred_fallthru
          _
      $region44: #{tpu_custom_call.1} parent=5 // pred_fallthru
        _
    $region6: #{tpu_custom_call.1} parent=1 // loop_footer
      %s17 = sadd.s32 1, %s13
    $region7: #{tpu_custom_call.1} parent=1 // loop_footer_branch
      %12 = sbr.rel target = $region3
    $region8: #{tpu_custom_call.1} parent=1 // loop_exit
      _
    %385 = vsyncpa [#allocation3], 1
    %s386 = scalar_lea.sflag [#allocation3], 1
    %387 = vsyncpa %s386, 1
    %388 = vsyncpa [#allocation4], 1
    %s389 = scalar_lea.sflag [#allocation4], 1
    %390 = vsyncpa %s389, 1

</llo_original>
